<compile_context>
chip_gen: v7x
topology: tpu7x:2x2x1
jax: 0.10.0
libtpu: 0.0.40
codegen_flags: <defaults>
</compile_context>

<pallas_src>
import functools

import jax
import jax.numpy as jnp
from jax.experimental import pallas as pl
from jax.experimental.pallas import tpu as pltpu


# Preferred output-row block.  Small enough that (row-block + resident U.T/X +
# double-buffering) stays far below even v7x's 64 MiB VMEM at realistic GSR
# sizes (lr~160, hr~320); large enough to amortize per-step overhead.
_PREF_ROW_BLOCK = 256
_VMEM_LIMIT_BYTES = 48 * 1024 * 1024  # < v7x 64 MiB physical, > all defaults


def _row_block(n, pref=_PREF_ROW_BLOCK):
    """Pick a row-block size that divides n (full dim if nothing nice fits)."""
    if n <= pref:
        return n
    for cand in (pref, 128, 64, 32, 16, 8):
        if n % cand == 0:
            return cand
    return n


# ----------------------------------------------------------------------------
# Kernel 1: adj = abs((W_sum @ U.T) @ X), then fill_diagonal_(1)
# ----------------------------------------------------------------------------
def _adj_kernel(w_ref, ut_ref, x_ref, o_ref, *, right_assoc):
    i = pl.program_id(0)
    tm = o_ref.shape[0]

    # bf16 MXU operands, f32 accumulation.
    w = w_ref[...].astype(jnp.bfloat16)     # [tm, lr]
    ut = ut_ref[...].astype(jnp.bfloat16)   # [lr, lr]
    x = x_ref[...].astype(jnp.bfloat16)     # [lr, F]

    if right_assoc:
        # U.T @ X first (cheaper when F < row block).
        m = jnp.dot(ut, x, preferred_element_type=jnp.float32).astype(jnp.bfloat16)
        f_d = jnp.dot(w, m, preferred_element_type=jnp.float32)      # [tm, F]
    else:
        b = jnp.dot(w, ut, preferred_element_type=jnp.float32).astype(jnp.bfloat16)
        f_d = jnp.dot(b, x, preferred_element_type=jnp.float32)      # [tm, F]

    # f32 epilogue on the VPU: abs then fill_diagonal_(1).
    f_d = jnp.abs(f_d)
    rows = jax.lax.broadcasted_iota(jnp.int32, f_d.shape, 0) + i * tm
    cols = jax.lax.broadcasted_iota(jnp.int32, f_d.shape, 1)
    o_ref[...] = jnp.where(rows == cols, 1.0, f_d)


def gsr_adj(w_sum, u_t, x):
    """adj = abs((w_sum @ u_t) @ x) with unit diagonal.

    w_sum: [hr, lr]  (W @ [I;I] already folded),  u_t: [lr, lr],  x: [lr, F].
    """
    hr, lr = w_sum.shape
    f_dim = x.shape[1]
    tm = _row_block(hr)
    grid = (hr // tm,)
    # Per row block: left assoc = tm*lr*lr + tm*lr*F, right = lr*lr*F + tm*lr*F.
    right_assoc = f_dim < tm

    kernel = functools.partial(_adj_kernel, right_assoc=right_assoc)
    return pl.pallas_call(
        kernel,
        out_shape=jax.ShapeDtypeStruct((hr, f_dim), jnp.float32),
        grid=grid,
        in_specs=[
            pl.BlockSpec((tm, lr), lambda i: (i, 0)),
            pl.BlockSpec((lr, lr), lambda i: (0, 0)),
            pl.BlockSpec((lr, f_dim), lambda i: (0, 0)),
        ],
        out_specs=pl.BlockSpec((tm, f_dim), lambda i: (i, 0)),
        compiler_params=pltpu.CompilerParams(
            dimension_semantics=("parallel",),
            vmem_limit_bytes=_VMEM_LIMIT_BYTES,
        ),
    )(w_sum, u_t, x)


# ----------------------------------------------------------------------------
# Kernel 2: Xout = abs( sym(adj @ adj.T) with unit diagonal )
# ----------------------------------------------------------------------------
def _gram_kernel(a_blk_ref, a_all_ref, o_ref):
    i = pl.program_id(0)
    tm = o_ref.shape[0]

    a_blk = a_blk_ref[...].astype(jnp.bfloat16)   # [tm, F]
    a_all = a_all_ref[...].astype(jnp.bfloat16)   # [hr, F]

    # S_blk = adj_blk @ adj.T  (contract the shared feature axis).
    s = jax.lax.dot_general(
        a_blk, a_all, (((1,), (1,)), ((), ())),
        preferred_element_type=jnp.float32,
    )                                             # [tm, hr]

    # (S + S.T)/2 of the reference is an exact no-op here: S = adj @ adj.T is
    # symmetric and S[j, i] is produced by the identical product/accumulation
    # order, so the symmetrization is skipped.
    rows = jax.lax.broadcasted_iota(jnp.int32, s.shape, 0) + i * tm
    cols = jax.lax.broadcasted_iota(jnp.int32, s.shape, 1)
    s = jnp.where(rows == cols, 1.0, s)           # fill_diagonal_(1)
    o_ref[...] = jnp.abs(s)                       # torch.abs(X)


def gsr_gram(adj):
    """Xout = abs(adj @ adj.T with unit diagonal).  adj: [hr, F] -> [hr, hr]."""
    hr, f_dim = adj.shape
    tm = _row_block(hr)
    grid = (hr // tm,)
    return pl.pallas_call(
        _gram_kernel,
        out_shape=jax.ShapeDtypeStruct((hr, hr), jnp.float32),
        grid=grid,
        in_specs=[
            pl.BlockSpec((tm, f_dim), lambda i: (i, 0)),   # row block of adj
            pl.BlockSpec((hr, f_dim), lambda i: (0, 0)),   # full adj (rhs of A@A.T)
        ],
        out_specs=pl.BlockSpec((tm, hr), lambda i: (i, 0)),
        compiler_params=pltpu.CompilerParams(
            dimension_semantics=("parallel",),
            vmem_limit_bytes=_VMEM_LIMIT_BYTES,
        ),
    )(adj, adj)


# ----------------------------------------------------------------------------
# GSRLayer forward
# ----------------------------------------------------------------------------
def gsr_layer_forward(weights, A, X):
    """weights: [hr, 2*lr], A: [lr, lr], X: [lr, F]  ->  (adj [hr,F], Xout [hr,hr])."""
    lr_dim = A.shape[0]
    assert weights.shape[1] == 2 * lr_dim, (
        "GSRLayer requires weights with 2*lr_dim columns (hr_dim == 2*lr_dim)")

    # TODO(synk): torch.linalg.eigh has no clean Pallas equivalent; the dense
    # symmetric eigendecomposition stays in jnp.linalg.eigh (XLA). Eigenvalues
    # are unused by the reference forward.
    _, u_lr = jnp.linalg.eigh(A, UPLO="U", symmetrize_input=False)
    u_t = u_lr.T

    # weights @ s_d with s_d = [I; I] is just the sum of the two column halves:
    # replaces an O(hr * 2lr * lr) matmul with an O(hr * lr) add (done once).
    w_sum = weights[:, :lr_dim] + weights[:, lr_dim:]          # [hr, lr]

    adj = gsr_adj(w_sum, u_t, X)       # abs((W@s_d) @ U.T @ X), diag = 1
    x_out = gsr_gram(adj)              # abs(adj @ adj.T), diag = 1
    return adj, x_out


# Plain-JAX reference (mirrors the PyTorch forward literally) for validation.
def gsr_layer_reference(weights, A, X):
    lr_dim = A.shape[0]
    _, u_lr = jnp.linalg.eigh(A, UPLO="U", symmetrize_input=False)
    eye = jnp.eye(lr_dim, dtype=jnp.float32)
    s_d = jnp.concatenate([eye, eye], axis=0)
    a = weights @ s_d
    b = a @ u_lr.T
    f_d = jnp.abs(b @ X)
    n = min(f_d.shape)
    f_d = f_d.at[jnp.arange(n), jnp.arange(n)].set(1.0)
    adj = f_d
    x_o = adj @ adj.T
    x_o = 0.5 * (x_o + x_o.T)
    m = x_o.shape[0]
    x_o = x_o.at[jnp.arange(m), jnp.arange(m)].set(1.0)
    return adj, jnp.abs(x_o)


# ----------------------------------------------------------------------------
if __name__ == "__main__":
    # Small shapes consistent with the module: hr_dim = 2 * lr_dim.
    lr_dim = 64
    hr_dim = 2 * lr_dim   # 128

    key = jax.random.PRNGKey(0)
    kw, ka, kx = jax.random.split(key, 3)

    # weight_variable_glorot(hr_dim): uniform(-r, r), r = sqrt(6 / (hr + hr)).
    init_range = float(jnp.sqrt(6.0 / (hr_dim + hr_dim)))
    weights = jax.random.uniform(
        kw, (hr_dim, hr_dim), jnp.float32, -init_range, init_range)

    # Symmetric low-resolution adjacency and node features.
    a_raw = jax.random.uniform(ka, (lr_dim, lr_dim), jnp.float32)
    A = 0.5 * (a_raw + a_raw.T)
    X = jax.random.normal(kx, (lr_dim, hr_dim), jnp.float32)

    adj, x_out = gsr_layer_forward(weights, A, X)
    jax.block_until_ready(adj)
    jax.block_until_ready(x_out)

    assert adj.shape == (hr_dim, hr_dim), adj.shape
    assert x_out.shape == (hr_dim, hr_dim), x_out.shape
    assert bool(jnp.all(jnp.isfinite(adj))) and bool(jnp.all(jnp.isfinite(x_out)))
    assert bool(jnp.allclose(jnp.diag(adj), 1.0))
    assert bool(jnp.allclose(jnp.diag(x_out), 1.0))

    # Numerical check vs. f32 reference (kernel uses bf16 MXU operands).
    adj_ref, x_ref = gsr_layer_reference(weights, A, X)
    err_adj = float(jnp.max(jnp.abs(adj - adj_ref)) / (jnp.max(jnp.abs(adj_ref)) + 1e-6))
    err_x = float(jnp.max(jnp.abs(x_out - x_ref)) / (jnp.max(jnp.abs(x_ref)) + 1e-6))
    assert err_adj < 0.1, f"adj mismatch: {err_adj}"
    assert err_x < 0.1, f"Xout mismatch: {err_x}"

    print("KERNEL_OK")
</pallas_src>

<mosaic_0001>
module attributes {stable_mosaic.version = 11 : i64} {
  func.func @_adj_kernel(%arg0: i32, %arg1: memref<128x64xf32, #tpu.memory_space<vmem>>, %arg2: memref<64x64xf32, #tpu.memory_space<vmem>>, %arg3: memref<64x128xf32, #tpu.memory_space<vmem>>, %arg4: memref<128x128xf32, #tpu.memory_space<vmem>>) attributes {dimension_semantics = [#tpu.dimension_semantics<parallel>], iteration_bounds = array<i64: 1>, scalar_prefetch = 0 : i64, scratch_operands = 0 : i64, tpu.core_type = #tpu.core_type<tc>, window_params = [{transform_indices = @transform_0, window_bounds = array<i64: 128, 64>}, {pipeline_mode = #tpu.pipeline_mode<synchronous>, transform_indices = @transform_1, window_bounds = array<i64: 64, 64>}, {pipeline_mode = #tpu.pipeline_mode<synchronous>, transform_indices = @transform_2, window_bounds = array<i64: 64, 128>}, {transform_indices = @transform_3, window_bounds = array<i64: 128, 128>}]} {
    %c0 = arith.constant 0 : index
    %c0_0 = arith.constant 0 : index
    %0 = vector.load %arg1[%c0, %c0_0] : memref<128x64xf32, #tpu.memory_space<vmem>>, vector<128x64xf32>
    %1 = arith.truncf %0 : vector<128x64xf32> to vector<128x64xbf16>
    %c0_1 = arith.constant 0 : index
    %c0_2 = arith.constant 0 : index
    %2 = vector.load %arg2[%c0_1, %c0_2] : memref<64x64xf32, #tpu.memory_space<vmem>>, vector<64x64xf32>
    %3 = arith.truncf %2 : vector<64x64xf32> to vector<64x64xbf16>
    %c0_3 = arith.constant 0 : index
    %c0_4 = arith.constant 0 : index
    %4 = vector.load %arg3[%c0_3, %c0_4] : memref<64x128xf32, #tpu.memory_space<vmem>>, vector<64x128xf32>
    %5 = arith.truncf %4 : vector<64x128xf32> to vector<64x128xbf16>
    %cst = arith.constant dense<0.000000e+00> : vector<128x64xf32>
    %6 = tpu.matmul %1, %3, %cst {dimension_numbers = #tpu.dot_dimension_numbers<[1], [0], [0], [1], [0, 0, 1, 1], [], []>} : vector<128x64xbf16>, vector<64x64xbf16>, vector<128x64xf32> -> vector<128x64xf32>
    %7 = arith.truncf %6 : vector<128x64xf32> to vector<128x64xbf16>
    %cst_5 = arith.constant dense<0.000000e+00> : vector<128x128xf32>
    %8 = tpu.matmul %7, %5, %cst_5 {dimension_numbers = #tpu.dot_dimension_numbers<[1], [0], [0], [1], [0, 0, 1, 1], [], []>} : vector<128x64xbf16>, vector<64x128xbf16>, vector<128x128xf32> -> vector<128x128xf32>
    %9 = math.absf %8 : vector<128x128xf32>
    %10 = tpu.iota {dimensions = array<i32: 0>} : vector<128x128xi32>
    %c128_i32 = arith.constant 128 : i32
    %11 = arith.muli %arg0, %c128_i32 : i32
    %12 = vector.broadcast %11 : i32 to vector<128x128xi32>
    %13 = arith.addi %10, %12 : vector<128x128xi32>
    %14 = tpu.iota {dimensions = array<i32: 1>} : vector<128x128xi32>
    %15 = arith.cmpi eq, %13, %14 : vector<128x128xi32>
    %cst_6 = arith.constant 1.000000e+00 : f32
    %16 = vector.broadcast %cst_6 : f32 to vector<128x128xf32>
    %17 = arith.select %15, %16, %9 : vector<128x128xi1>, vector<128x128xf32>
    %c0_7 = arith.constant 0 : index
    %c0_8 = arith.constant 0 : index
    %18 = vector.load %arg4[%c0_7, %c0_8] : memref<128x128xf32, #tpu.memory_space<vmem>>, vector<128x128xf32>
    tpu.vector_store %arg4[%c0_7, %c0_8], %17 {strides = array<i32>} : memref<128x128xf32, #tpu.memory_space<vmem>>, vector<128x128xf32>,
    return
  }
  func.func @transform_0(%arg0: i32) -> (i32, i32) {
    %c0_i32 = arith.constant 0 : i32
    %c0_i32_0 = arith.constant 0 : i32
    return %arg0, %c0_i32 : i32, i32
  }
  func.func @transform_1(%arg0: i32) -> (i32, i32) {
    %c0_i32 = arith.constant 0 : i32
    %c0_i32_0 = arith.constant 0 : i32
    %c0_i32_1 = arith.constant 0 : i32
    return %c0_i32, %c0_i32_0 : i32, i32
  }
  func.func @transform_2(%arg0: i32) -> (i32, i32) {
    %c0_i32 = arith.constant 0 : i32
    %c0_i32_0 = arith.constant 0 : i32
    %c0_i32_1 = arith.constant 0 : i32
    return %c0_i32, %c0_i32_0 : i32, i32
  }
  func.func @transform_3(%arg0: i32) -> (i32, i32) {
    %c0_i32 = arith.constant 0 : i32
    %c0_i32_0 = arith.constant 0 : i32
    return %arg0, %c0_i32 : i32, i32
  }
}

</mosaic_0001>

<llo_original>
// kernel: tpu_custom_call.1
$region0: #{tpu_custom_call.1}
  #allocation0 [shape = 'u32[]', space=smem, size = 0x4, offset = 0x4, fixed_abs, tag = 'smem constant byte address 0x4 - core index']
  #allocation1 [shape = 'u32[144,128]{1,0:T(1,128)}', space=vmem, size = 0x12000, scoped, tag = 'internal scratch']
  %s0 = inlined_call_operand.vmem [shape: f32[128,64], index: 0, kind: input, shape index: {}]
  %s1 = inlined_call_operand.vmem [shape: f32[64,64], index: 1, kind: input, shape index: {}]
  %s2 = inlined_call_operand.vmem [shape: f32[64,128], index: 2, kind: input, shape index: {}]
  %s3 = inlined_call_operand.hbm [shape: f32[128,128], index: 3, kind: output, shape index: {}]
  %s4 = sld [smem:[#allocation0]]
  $region22: #{tpu_custom_call.1} parent=0
    _
  %s6 = ssub.s32 1, %s4
  %s7 = scalar_select 0, %s6, %s4
  $region1: #{tpu_custom_call.1} parent=0
    #allocation2 [shape = 'u8[65536]{0}', space=vmem, size = 0x10000, scoped, tag = 'output window, operand 0, single buffered']
    #allocation3 [shape = 's32[1]{0}', space=sflag, size = 0x4, scoped, tag = 'scoped memory for tpu_custom_call.1']
    %8 = vsyncpa [#allocation3], 0
    // Predicated region
    $region2: #{tpu_custom_call.1} parent=1 // pred_check
      _
    $region3: #{tpu_custom_call.1} parent=1 // pred_check_branch
      %10 = sbr.rel (0) target = $region5
    $region4: #{tpu_custom_call.1} parent=1 // pred_region
      _
    $region5: #{tpu_custom_call.1} parent=1 // pred_fallthru
      _
    // Predicated region
    $region6: #{tpu_custom_call.1} parent=1 // pred_check
      _
    $region7: #{tpu_custom_call.1} parent=1 // pred_check_branch
      %12 = sbr.rel (0) target = $region9
    $region8: #{tpu_custom_call.1} parent=1 // pred_region
      _
    $region9: #{tpu_custom_call.1} parent=1 // pred_fallthru
      _
    // Predicated region
    $region10: #{tpu_custom_call.1} parent=1 // pred_check
      _
    $region11: #{tpu_custom_call.1} parent=1 // pred_check_branch
      %14 = sbr.rel (0) target = $region13
    $region12: #{tpu_custom_call.1} parent=1 // pred_region
      _
    $region13: #{tpu_custom_call.1} parent=1 // pred_fallthru
      _
    %v16 = vld [vmem:[%s0] sm:$0xff]
    %v17 = vld [vmem:[%s0 + $0x8] sm:$0xff]
    %v18 = vld [vmem:[%s0 + $0x10] sm:$0xff]
    %v19 = vld [vmem:[%s0 + $0x18] sm:$0xff]
    %v20 = vld [vmem:[%s0 + $0x20] sm:$0xff]
    %v21 = vld [vmem:[%s0 + $0x28] sm:$0xff]
    %v22 = vld [vmem:[%s0 + $0x30] sm:$0xff]
    %v23 = vld [vmem:[%s0 + $0x38] sm:$0xff]
    %v24 = vld [vmem:[%s0 + $0x40] sm:$0xff]
    %v25 = vld [vmem:[%s0 + $0x48] sm:$0xff]
    %v26 = vld [vmem:[%s0 + $0x50] sm:$0xff]
    %v27 = vld [vmem:[%s0 + $0x58] sm:$0xff]
    %v28 = vld [vmem:[%s0 + $0x60] sm:$0xff]
    %v29 = vld [vmem:[%s0 + $0x68] sm:$0xff]
    %v30 = vld [vmem:[%s0 + $0x70] sm:$0xff]
    %v31 = vld [vmem:[%s0 + $0x78] sm:$0xff]
    %v32 = vpack.c.bf16 %v17, %v16
    %v33 = vpack.c.bf16 %v19, %v18
    %v34 = vpack.c.bf16 %v21, %v20
    %v35 = vpack.c.bf16 %v23, %v22
    %v36 = vpack.c.bf16 %v25, %v24
    %v37 = vpack.c.bf16 %v27, %v26
    %v38 = vpack.c.bf16 %v29, %v28
    %v39 = vpack.c.bf16 %v31, %v30
    %v40 = vld [vmem:[%s1] sm:$0xff]
    %v41 = vld [vmem:[%s1 + $0x8] sm:$0xff]
    %v42 = vld [vmem:[%s1 + $0x10] sm:$0xff]
    %v43 = vld [vmem:[%s1 + $0x18] sm:$0xff]
    %v44 = vld [vmem:[%s1 + $0x20] sm:$0xff]
    %v45 = vld [vmem:[%s1 + $0x28] sm:$0xff]
    %v46 = vld [vmem:[%s1 + $0x30] sm:$0xff]
    %v47 = vld [vmem:[%s1 + $0x38] sm:$0xff]
    %v48 = vpack.c.bf16 %v41, %v40
    %v49 = vpack.c.bf16 %v43, %v42
    %v50 = vpack.c.bf16 %v45, %v44
    %v51 = vpack.c.bf16 %v47, %v46
    %v52 = vld [vmem:[%s2] sm:$0xff]
    %v53 = vld [vmem:[%s2 + $0x8] sm:$0xff]
    %v54 = vld [vmem:[%s2 + $0x10] sm:$0xff]
    %v55 = vld [vmem:[%s2 + $0x18] sm:$0xff]
    %v56 = vld [vmem:[%s2 + $0x20] sm:$0xff]
    %v57 = vld [vmem:[%s2 + $0x28] sm:$0xff]
    %v58 = vld [vmem:[%s2 + $0x30] sm:$0xff]
    %v59 = vld [vmem:[%s2 + $0x38] sm:$0xff]
    %v60 = vpack.c.bf16 %v53, %v52
    %v61 = vpack.c.bf16 %v55, %v54
    %v62 = vpack.c.bf16 %v57, %v56
    %v63 = vpack.c.bf16 %v59, %v58
    %vm64 = vcmask 523264
    %v66 = vsel %vm64, %v32, 0
    %v69 = vsel %vm64, %v33, 0
    %v72 = vsel %vm64, %v34, 0
    %v75 = vsel %vm64, %v35, 0
    %v78 = vsel %vm64, %v36, 0
    %v81 = vsel %vm64, %v37, 0
    %v84 = vsel %vm64, %v38, 0
    %v87 = vsel %vm64, %v39, 0
    %89 = vmatprep.subr.bf16.mxu0 0
    %90 = vmatpush1.bf16.msra.mxu0 %v48
    %91 = vmatprep.subr.bf16.mxu0 0
    %92 = vmatpush1.bf16.msra.mxu0 %v49
    %93 = vmatprep.subr.bf16.mxu0 0
    %94 = vmatpush1.bf16.msra.mxu0 %v50
    %95 = vmatprep.subr.bf16.mxu0 0
    %96 = vmatpush1.bf16.msra.mxu0 %v51
    %97 = vmatprep.subr.bf16.mxu0 0
    %98 = vmatpush1.bf16.msra.mxu0 0
    %99 = vmatprep.subr.bf16.mxu0 0
    %100 = vmatpush1.bf16.msra.mxu0 0
    %101 = vmatprep.subr.bf16.mxu0 0
    %102 = vmatpush1.bf16.msra.mxu0 0
    %103 = vmatprep.subr.bf16.mxu0 0
    %104 = vmatpush1.bf16.msra.mxu0 0
    %105 = vmatprep.subr.bf16.mxu0 0
    %106 = vmatpush1.bf16.msra.mxu0 0
    %107 = vmatprep.subr.bf16.mxu0 0
    %108 = vmatpush1.bf16.msra.mxu0 0
    %109 = vmatprep.subr.bf16.mxu0 0
    %110 = vmatpush1.bf16.msra.mxu0 0
    %111 = vmatprep.subr.bf16.mxu0 0
    %112 = vmatpush1.bf16.msra.mxu0 0
    %113 = vmatprep.subr.bf16.mxu0 0
    %114 = vmatpush1.bf16.msra.mxu0 0
    %115 = vmatprep.subr.bf16.mxu0 0
    %116 = vmatpush1.bf16.msra.mxu0 0
    %117 = vmatprep.subr.bf16.mxu0 0
    %118 = vmatpush1.bf16.msra.mxu0 0
    %119 = vmatprep.subr.bf16.mxu0 0
    %120 = vmatpush1.bf16.msra.mxu0 0
    %121 = vmatprep.mubr.bf16.mxu0 0
    %122 = vmatmul.mubr.bf16.gmra.mrb[0].mxu0 %v66
    %v123 = vpop.f32.mrb[0].mxu0
    %v124 = vadd.f32 0.0, %v123
    %v125 = vpop.f32.mrb[0].mxu0
    %v126 = vpop.f32.mrb[0].mxu0
    %v127 = vadd.f32 0.0, %v126
    %v128 = vpop.f32.mrb[0].mxu0
    %129 = vmatprep.mubr.bf16.mxu0 0
    %130 = vmatmul.mubr.bf16.gmra.mrb[0].mxu0 %v69
    %v131 = vpop.f32.mrb[0].mxu0
    %v132 = vadd.f32 0.0, %v131
    %v133 = vpop.f32.mrb[0].mxu0
    %v134 = vpop.f32.mrb[0].mxu0
    %v135 = vadd.f32 0.0, %v134
    %v136 = vpop.f32.mrb[0].mxu0
    %137 = vmatprep.mubr.bf16.mxu0 0
    %138 = vmatmul.mubr.bf16.gmra.mrb[0].mxu0 %v72
    %v139 = vpop.f32.mrb[0].mxu0
    %v140 = vadd.f32 0.0, %v139
    %v141 = vpop.f32.mrb[0].mxu0
    %v142 = vpop.f32.mrb[0].mxu0
    %v143 = vadd.f32 0.0, %v142
    %v144 = vpop.f32.mrb[0].mxu0
    %145 = vmatprep.mubr.bf16.mxu0 0
    %146 = vmatmul.mubr.bf16.gmra.mrb[0].mxu0 %v75
    %v147 = vpop.f32.mrb[0].mxu0
    %v148 = vadd.f32 0.0, %v147
    %v149 = vpop.f32.mrb[0].mxu0
    %v150 = vpop.f32.mrb[0].mxu0
    %v151 = vadd.f32 0.0, %v150
    %v152 = vpop.f32.mrb[0].mxu0
    %153 = vmatprep.mubr.bf16.mxu0 0
    %154 = vmatmul.mubr.bf16.gmra.mrb[0].mxu0 %v78
    %v155 = vpop.f32.mrb[0].mxu0
    %v156 = vadd.f32 0.0, %v155
    %v157 = vpop.f32.mrb[0].mxu0
    %v158 = vpop.f32.mrb[0].mxu0
    %v159 = vadd.f32 0.0, %v158
    %v160 = vpop.f32.mrb[0].mxu0
    %161 = vmatprep.mubr.bf16.mxu0 0
    %162 = vmatmul.mubr.bf16.gmra.mrb[0].mxu0 %v81
    %v163 = vpop.f32.mrb[0].mxu0
    %v164 = vadd.f32 0.0, %v163
    %v165 = vpop.f32.mrb[0].mxu0
    %v166 = vpop.f32.mrb[0].mxu0
    %v167 = vadd.f32 0.0, %v166
    %v168 = vpop.f32.mrb[0].mxu0
    %169 = vmatprep.mubr.bf16.mxu0 0
    %170 = vmatmul.mubr.bf16.gmra.mrb[0].mxu0 %v84
    %v171 = vpop.f32.mrb[0].mxu0
    %v172 = vadd.f32 0.0, %v171
    %v173 = vpop.f32.mrb[0].mxu0
    %v174 = vpop.f32.mrb[0].mxu0
    %v175 = vadd.f32 0.0, %v174
    %v176 = vpop.f32.mrb[0].mxu0
    %177 = vmatprep.mubr.bf16.mxu0 0
    %178 = vmatmul.mubr.bf16.gmra.mrb[0].mxu0 %v87
    %v179 = vpop.f32.mrb[0].mxu0
    %v180 = vadd.f32 0.0, %v179
    %v181 = vpop.f32.mrb[0].mxu0
    %v182 = vpop.f32.mrb[0].mxu0
    %v183 = vadd.f32 0.0, %v182
    %v184 = vpop.f32.mrb[0].mxu0
    %185 = vdwg.mxu0
    %v186 = vpack.c.bf16 %v127, %v124
    %v187 = vpack.c.bf16 %v135, %v132
    %v188 = vpack.c.bf16 %v143, %v140
    %v189 = vpack.c.bf16 %v151, %v148
    %v190 = vpack.c.bf16 %v159, %v156
    %v191 = vpack.c.bf16 %v167, %v164
    %v192 = vpack.c.bf16 %v175, %v172
    %v193 = vpack.c.bf16 %v183, %v180
    %v195 = vsel %vm64, %v186, 0
    %v198 = vsel %vm64, %v187, 0
    %v201 = vsel %vm64, %v188, 0
    %v204 = vsel %vm64, %v189, 0
    %v207 = vsel %vm64, %v190, 0
    %v210 = vsel %vm64, %v191, 0
    %v213 = vsel %vm64, %v192, 0
    %v216 = vsel %vm64, %v193, 0
    %218 = vmatprep.subr.bf16.mxu0 0
    %219 = vmatpush1.bf16.msra.mxu0 %v60
    %220 = vmatprep.subr.bf16.mxu0 0
    %221 = vmatpush1.bf16.msra.mxu0 %v61
    %222 = vmatprep.subr.bf16.mxu0 0
    %223 = vmatpush1.bf16.msra.mxu0 %v62
    %224 = vmatprep.subr.bf16.mxu0 0
    %225 = vmatpush1.bf16.msra.mxu0 %v63
    %226 = vmatprep.subr.bf16.mxu0 0
    %227 = vmatpush1.bf16.msra.mxu0 0
    %228 = vmatprep.subr.bf16.mxu0 0
    %229 = vmatpush1.bf16.msra.mxu0 0
    %230 = vmatprep.subr.bf16.mxu0 0
    %231 = vmatpush1.bf16.msra.mxu0 0
    %232 = vmatprep.subr.bf16.mxu0 0
    %233 = vmatpush1.bf16.msra.mxu0 0
    %234 = vmatprep.subr.bf16.mxu0 0
    %235 = vmatpush1.bf16.msra.mxu0 0
    %236 = vmatprep.subr.bf16.mxu0 0
    %237 = vmatpush1.bf16.msra.mxu0 0
    %238 = vmatprep.subr.bf16.mxu0 0
    %239 = vmatpush1.bf16.msra.mxu0 0
    %240 = vmatprep.subr.bf16.mxu0 0
    %241 = vmatpush1.bf16.msra.mxu0 0
    %242 = vmatprep.subr.bf16.mxu0 0
    %243 = vmatpush1.bf16.msra.mxu0 0
    %244 = vmatprep.subr.bf16.mxu0 0
    %245 = vmatpush1.bf16.msra.mxu0 0
    %246 = vmatprep.subr.bf16.mxu0 0
    %247 = vmatpush1.bf16.msra.mxu0 0
    %248 = vmatprep.subr.bf16.mxu0 0
    %249 = vmatpush1.bf16.msra.mxu0 0
    %250 = vmatprep.mubr.bf16.mxu0 0
    %251 = vmatmul.mubr.bf16.gmra.mrb[0].mxu0 %v195
    %v252 = vpop.f32.mrb[0].mxu0
    %v253 = vadd.f32 0.0, %v252
    %v254 = vpop.f32.mrb[0].mxu0
    %v255 = vpop.f32.mrb[0].mxu0
    %v256 = vadd.f32 0.0, %v255
    %v257 = vpop.f32.mrb[0].mxu0
    %258 = vmatprep.mubr.bf16.mxu0 0
    %259 = vmatmul.mubr.bf16.gmra.mrb[0].mxu0 %v198
    %v260 = vpop.f32.mrb[0].mxu0
    %v261 = vadd.f32 0.0, %v260
    %v262 = vpop.f32.mrb[0].mxu0
    %v263 = vpop.f32.mrb[0].mxu0
    %v264 = vadd.f32 0.0, %v263
    %v265 = vpop.f32.mrb[0].mxu0
    %266 = vmatprep.mubr.bf16.mxu0 0
    %267 = vmatmul.mubr.bf16.gmra.mrb[0].mxu0 %v201
    %v268 = vpop.f32.mrb[0].mxu0
    %v269 = vadd.f32 0.0, %v268
    %v270 = vpop.f32.mrb[0].mxu0
    %v271 = vpop.f32.mrb[0].mxu0
    %v272 = vadd.f32 0.0, %v271
    %v273 = vpop.f32.mrb[0].mxu0
    %274 = vmatprep.mubr.bf16.mxu0 0
    %275 = vmatmul.mubr.bf16.gmra.mrb[0].mxu0 %v204
    %v276 = vpop.f32.mrb[0].mxu0
    %v277 = vadd.f32 0.0, %v276
    %v278 = vpop.f32.mrb[0].mxu0
    %v279 = vpop.f32.mrb[0].mxu0
    %v280 = vadd.f32 0.0, %v279
    %v281 = vpop.f32.mrb[0].mxu0
    %282 = vmatprep.mubr.bf16.mxu0 0
    %283 = vmatmul.mubr.bf16.gmra.mrb[0].mxu0 %v207
    %v284 = vpop.f32.mrb[0].mxu0
    %v285 = vadd.f32 0.0, %v284
    %v286 = vpop.f32.mrb[0].mxu0
    %v287 = vpop.f32.mrb[0].mxu0
    %v288 = vadd.f32 0.0, %v287
    %v289 = vpop.f32.mrb[0].mxu0
    %290 = vmatprep.mubr.bf16.mxu0 0
    %291 = vmatmul.mubr.bf16.gmra.mrb[0].mxu0 %v210
    %v292 = vpop.f32.mrb[0].mxu0
    %v293 = vadd.f32 0.0, %v292
    %v294 = vpop.f32.mrb[0].mxu0
    %v295 = vpop.f32.mrb[0].mxu0
    %v296 = vadd.f32 0.0, %v295
    %v297 = vpop.f32.mrb[0].mxu0
    %298 = vmatprep.mubr.bf16.mxu0 0
    %299 = vmatmul.mubr.bf16.gmra.mrb[0].mxu0 %v213
    %v300 = vpop.f32.mrb[0].mxu0
    %v301 = vadd.f32 0.0, %v300
    %v302 = vpop.f32.mrb[0].mxu0
    %v303 = vpop.f32.mrb[0].mxu0
    %v304 = vadd.f32 0.0, %v303
    %v305 = vpop.f32.mrb[0].mxu0
    %306 = vmatprep.mubr.bf16.mxu0 0
    %307 = vmatmul.mubr.bf16.gmra.mrb[0].mxu0 %v216
    %v308 = vpop.f32.mrb[0].mxu0
    %v309 = vadd.f32 0.0, %v308
    %v310 = vpop.f32.mrb[0].mxu0
    %v311 = vpop.f32.mrb[0].mxu0
    %v312 = vadd.f32 0.0, %v311
    %v313 = vpop.f32.mrb[0].mxu0
    %314 = vdwg.mxu0
    %v315 = vand.u32 2147483647, %v253
    %v316 = vand.u32 2147483647, %v256
    %v317 = vand.u32 2147483647, %v261
    %v318 = vand.u32 2147483647, %v264
    %v319 = vand.u32 2147483647, %v269
    %v320 = vand.u32 2147483647, %v272
    %v321 = vand.u32 2147483647, %v277
    %v322 = vand.u32 2147483647, %v280
    %v323 = vand.u32 2147483647, %v285
    %v324 = vand.u32 2147483647, %v288
    %v325 = vand.u32 2147483647, %v293
    %v326 = vand.u32 2147483647, %v296
    %v327 = vand.u32 2147483647, %v301
    %v328 = vand.u32 2147483647, %v304
    %v329 = vand.u32 2147483647, %v309
    %v330 = vand.u32 2147483647, %v312
    %v331 = vlaneseq
    %v332 = vshrl.u32 %v331, 7
    %v333 = vadd.s32 %v332, 8
    %v334 = vadd.s32 %v332, 16
    %v335 = vadd.s32 %v332, 24
    %v336 = vadd.s32 %v332, 32
    %v337 = vadd.s32 %v332, 40
    %v338 = vadd.s32 %v332, 48
    %v339 = vadd.s32 %v332, 56
    %v340 = vadd.s32 %v332, 64
    %v341 = vadd.s32 %v332, 72
    %v342 = vadd.s32 %v332, 80
    %v343 = vadd.s32 %v332, 88
    %v344 = vadd.s32 %v332, 96
    %v345 = vadd.s32 %v332, 104
    %v346 = vadd.s32 %v332, 112
    %v347 = vadd.s32 %v332, 120
    %s348 = smul.u32 0, 128
    %v349 = vstv %s348
    %v350 = vadd.s32 %v332, %v349
    %v351 = vadd.s32 %v333, %v349
    %v352 = vadd.s32 %v334, %v349
    %v353 = vadd.s32 %v335, %v349
    %v354 = vadd.s32 %v336, %v349
    %v355 = vadd.s32 %v337, %v349
    %v356 = vadd.s32 %v338, %v349
    %v357 = vadd.s32 %v339, %v349
    %v358 = vadd.s32 %v340, %v349
    %v359 = vadd.s32 %v341, %v349
    %v360 = vadd.s32 %v342, %v349
    %v361 = vadd.s32 %v343, %v349
    %v362 = vadd.s32 %v344, %v349
    %v363 = vadd.s32 %v345, %v349
    %v364 = vadd.s32 %v346, %v349
    %v365 = vadd.s32 %v347, %v349
    %v366 = vlaneseq
    %v367 = vand.u32 %v366, 127
    %vm368 = vcmp.eq.s32.totalorder %v350, %v367
    %vm369 = vcmp.eq.s32.totalorder %v351, %v367
    %vm370 = vcmp.eq.s32.totalorder %v352, %v367
    %vm371 = vcmp.eq.s32.totalorder %v353, %v367
    %vm372 = vcmp.eq.s32.totalorder %v354, %v367
    %vm373 = vcmp.eq.s32.totalorder %v355, %v367
    %vm374 = vcmp.eq.s32.totalorder %v356, %v367
    %vm375 = vcmp.eq.s32.totalorder %v357, %v367
    %vm376 = vcmp.eq.s32.totalorder %v358, %v367
    %vm377 = vcmp.eq.s32.totalorder %v359, %v367
    %vm378 = vcmp.eq.s32.totalorder %v360, %v367
    %vm379 = vcmp.eq.s32.totalorder %v361, %v367
    %vm380 = vcmp.eq.s32.totalorder %v362, %v367
    %vm381 = vcmp.eq.s32.totalorder %v363, %v367
    %vm382 = vcmp.eq.s32.totalorder %v364, %v367
    %vm383 = vcmp.eq.s32.totalorder %v365, %v367
    %v384 = vsel %vm368, 1.0, %v315
    %v385 = vsel %vm369, 1.0, %v316
    %v386 = vsel %vm370, 1.0, %v317
    %v387 = vsel %vm371, 1.0, %v318
    %v388 = vsel %vm372, 1.0, %v319
    %v389 = vsel %vm373, 1.0, %v320
    %v390 = vsel %vm374, 1.0, %v321
    %v391 = vsel %vm375, 1.0, %v322
    %v392 = vsel %vm376, 1.0, %v323
    %v393 = vsel %vm377, 1.0, %v324
    %v394 = vsel %vm378, 1.0, %v325
    %v395 = vsel %vm379, 1.0, %v326
    %v396 = vsel %vm380, 1.0, %v327
    %v397 = vsel %vm381, 1.0, %v328
    %v398 = vsel %vm382, 1.0, %v329
    %v399 = vsel %vm383, 1.0, %v330
    %400 = vst [vmem:[#allocation2] sm:$0xff] %v384
    %401 = vst [vmem:[#allocation2 + $0x8] sm:$0xff] %v385
    %402 = vst [vmem:[#allocation2 + $0x10] sm:$0xff] %v386
    %403 = vst [vmem:[#allocation2 + $0x18] sm:$0xff] %v387
    %404 = vst [vmem:[#allocation2 + $0x20] sm:$0xff] %v388
    %405 = vst [vmem:[#allocation2 + $0x28] sm:$0xff] %v389
    %406 = vst [vmem:[#allocation2 + $0x30] sm:$0xff] %v390
    %407 = vst [vmem:[#allocation2 + $0x38] sm:$0xff] %v391
    %408 = vst [vmem:[#allocation2 + $0x40] sm:$0xff] %v392
    %409 = vst [vmem:[#allocation2 + $0x48] sm:$0xff] %v393
    %410 = vst [vmem:[#allocation2 + $0x50] sm:$0xff] %v394
    %411 = vst [vmem:[#allocation2 + $0x58] sm:$0xff] %v395
    %412 = vst [vmem:[#allocation2 + $0x60] sm:$0xff] %v396
    %413 = vst [vmem:[#allocation2 + $0x68] sm:$0xff] %v397
    %414 = vst [vmem:[#allocation2 + $0x70] sm:$0xff] %v398
    %415 = vst [vmem:[#allocation2 + $0x78] sm:$0xff] %v399
    // Predicated region
    $region14: #{tpu_custom_call.1} parent=1 // pred_check
      _
    $region15: #{tpu_custom_call.1} parent=1 // pred_check_branch
      %417 = sbr.rel (0) target = $region17
    $region16: #{tpu_custom_call.1} parent=1 // pred_region
      %s419 = ssub.s32 2048, 2048
      %420 = vsyncadd [#allocation3], %s419
      %s421 = sshll.u32 [#allocation2], 4
      %s422 = int_to_ptr.vmem [resolvable:$true] %s421
      %427 = dma.vmem_to_hbm [thread:$0]  %s422, 2048, %s3, [#allocation3], 128, 128, 8
    $region17: #{tpu_custom_call.1} parent=1 // pred_fallthru
      _
    // Predicated region
    $region18: #{tpu_custom_call.1} parent=1 // pred_check
      _
    $region19: #{tpu_custom_call.1} parent=1 // pred_check_branch
      %429 = sbr.rel (0) target = $region21
    $region20: #{tpu_custom_call.1} parent=1 // pred_region
      %430 = dma.done [#allocation3], 2048
    $region21: #{tpu_custom_call.1} parent=1 // pred_fallthru
      _
    %431 = vsyncpa [#allocation3], 1

</llo_original>
